<compile_context>
chip_gen: v5e
topology: v5e:2x2
jax: 0.10.0
libtpu: 0.0.40
codegen_flags: <defaults>
</compile_context>

<pallas_src>
import functools

import jax
import jax.numpy as jnp
from jax.experimental import pallas as pl
from jax.experimental.pallas import tpu as pltpu


_VMEM_BUDGET = 28 * 1024 * 1024   # target for (double-buffered) data blocks
_VMEM_LIMIT = 48 * 1024 * 1024    # scoped-VMEM limit: > our budget, < v7x 64 MiB


def _round_up(x: int, m: int) -> int:
    return (x + m - 1) // m * m


def _patch_embed_kernel(p_ref, w_ref, b_ref, o_ref, acc_ref):
    # MXU matmul (compute-dtype operands, f32 accumulate) with K accumulation
    # across the innermost ("arbitrary") grid axis; bias add at finalize.
    k = pl.program_id(2)

    @pl.when(k == 0)
    def _():
        acc_ref[...] = jnp.zeros_like(acc_ref)

    acc_ref[...] += jnp.dot(p_ref[...], w_ref[...],
                            preferred_element_type=jnp.float32)

    @pl.when(k == pl.num_programs(2) - 1)
    def _():
        o_ref[...] = (acc_ref[...] + b_ref[...]).astype(o_ref.dtype)


@functools.partial(
    jax.jit, static_argnames=("patch_size", "compute_dtype", "out_dtype"))
def patch_embed(x, weight, bias, *, patch_size,
                compute_dtype=jnp.bfloat16, out_dtype=None):
    """x: (B, C, H, W); weight: (E, C, ph, pw) (Conv2d layout); bias: (E,)."""
    B, C, H, W = x.shape
    E = weight.shape[0]
    ph, pw = patch_size
    if H % ph != 0 or W % pw != 0:
        raise ValueError(
            f"Input size ({H},{W}) not divisible by patch size ({ph},{pw})")
    gh, gw = H // ph, W // pw
    num_patches = gh * gw
    out_dtype = x.dtype if out_dtype is None else out_dtype

    M = B * num_patches
    K = C * ph * pw

    # --- glue: patch extraction in the compute dtype (half-width relayout) ---
    # (B, C, gh, ph, gw, pw) -> (B, gh, gw, C, ph, pw) -> (B*N, C*ph*pw)
    xc = x.astype(compute_dtype)
    patches = xc.reshape(B, C, gh, ph, gw, pw)
    patches = patches.transpose(0, 2, 4, 1, 3, 5).reshape(M, K)

    # Conv2d weight (E, C, ph, pw) -> (C*ph*pw, E) so the kernel does P @ W.
    w_mat = weight.reshape(E, K).T.astype(compute_dtype)
    b_row = bias.astype(jnp.float32)

    # --- tile selection: lane/MXU aligned, VMEM-budgeted ---
    K_pad = _round_up(K, 128)
    E_pad = _round_up(E, 128)

    # E tile: whole (padded) E per tile for typical ViT widths; split when wide.
    if E_pad <= 1024:
        TE = E_pad
    else:
        TE = 512
        E_pad = _round_up(E_pad, TE)

    # K tile: keep the whole K per step unless it is large; then accumulate
    # over an innermost grid axis so the weight block stays VMEM-bounded.
    if K_pad <= 2048:
        TK = K_pad
    else:
        TK = 2048
        K_pad = _round_up(K_pad, TK)

    c_bytes = jnp.dtype(compute_dtype).itemsize
    o_bytes = jnp.dtype(out_dtype).itemsize

    def _footprint(tm):
        return (2 * tm * TK * c_bytes        # patches (double-buffered)
                + 2 * TK * TE * c_bytes      # weight (double-buffered)
                + 2 * TE * 4                 # bias row
                + 2 * tm * TE * o_bytes      # output (double-buffered)
                + tm * TE * 4)               # f32 accumulator scratch

    # M tile: as big as the VMEM budget allows (fewer steps amortize the
    # ~0.35us/step pipeline overhead), multiples of 128.
    TM = min(1024, _round_up(M, 128))
    while TM > 128 and _footprint(TM) > _VMEM_BUDGET:
        TM -= 128
    M_pad = _round_up(M, TM)

    n_e = E_pad // TE
    n_m = M_pad // TM
    n_k = K_pad // TK

    # v7x has two TensorCores: make sure the parallel grid has >= 2 tiles.
    if n_e * n_m < 2:
        TM = M_pad // 2          # M_pad is a multiple of 128 -> TM multiple of 64
        n_m = 2

    # --- padding to the padded/aligned shapes (skipped when already aligned) ---
    if M_pad != M or K_pad != K:
        patches = jnp.pad(patches, ((0, M_pad - M), (0, K_pad - K)))
    if K_pad != K or E_pad != E:
        w_mat = jnp.pad(w_mat, ((0, K_pad - K), (0, E_pad - E)))
    if E_pad != E:
        b_row = jnp.pad(b_row, (0, E_pad - E))
    b_row = b_row.reshape(1, E_pad)

    cost = pl.CostEstimate(
        flops=2 * M_pad * K_pad * E_pad,
        transcendentals=0,
        bytes_accessed=(patches.size * c_bytes
                        + w_mat.size * c_bytes
                        + b_row.size * 4
                        + M_pad * E_pad * o_bytes),
    )

    # Grid = (E tiles, M tiles, K tiles); K is innermost ("arbitrary") for the
    # accumulator, M is the next-fastest axis so for the common n_k == 1 case
    # the weight/bias block index stays constant across consecutive steps and
    # they are fetched only once per E tile while patches/output stream.
    out = pl.pallas_call(
        _patch_embed_kernel,
        out_shape=jax.ShapeDtypeStruct((M_pad, E_pad), out_dtype),
        grid_spec=pltpu.PrefetchScalarGridSpec(
            num_scalar_prefetch=0,
            grid=(n_e, n_m, n_k),
            in_specs=[
                pl.BlockSpec((TM, TK), lambda j, i, k: (i, k)),   # patches
                pl.BlockSpec((TK, TE), lambda j, i, k: (k, j)),   # weight
                pl.BlockSpec((1, TE), lambda j, i, k: (0, j)),    # bias
            ],
            out_specs=pl.BlockSpec((TM, TE), lambda j, i, k: (i, j)),
            scratch_shapes=[pltpu.VMEM((TM, TE), jnp.float32)],
        ),
        compiler_params=pltpu.CompilerParams(
            dimension_semantics=("parallel", "parallel", "arbitrary"),
            vmem_limit_bytes=_VMEM_LIMIT,
        ),
        cost_estimate=cost,
    )(patches, w_mat, b_row)

    # Strip padding; (B*N, E) -> (B, N, E)  == conv.flatten(2).transpose(1, 2)
    return out[:M, :E].reshape(B, num_patches, E)


if __name__ == "__main__":
    # Small, PatchEmbed-consistent shapes.
    B, C, H, W = 2, 4, 16, 16
    patch = (4, 4)
    embed_dim = 32

    key = jax.random.PRNGKey(0)
    kx, kw, kb = jax.random.split(key, 3)

    x = jax.random.normal(kx, (B, C, H, W), dtype=jnp.float32)
    # Deterministic synthetic parameters (Conv2d weight/bias shapes).
    weight = jax.random.normal(kw, (embed_dim, C, patch[0], patch[1]),
                               dtype=jnp.float32) * 0.02
    bias = jax.random.normal(kb, (embed_dim,), dtype=jnp.float32) * 0.02

    # Reference: lax conv (same semantics as nn.Conv2d with stride == kernel),
    # then flatten(2).transpose(1, 2).
    ref = jax.lax.conv_general_dilated(
        x, weight, window_strides=patch, padding="VALID",
        dimension_numbers=("NCHW", "OIHW", "NCHW"))
    ref = ref + bias.reshape(1, embed_dim, 1, 1)
    ref = ref.reshape(B, embed_dim, -1).transpose(0, 2, 1)

    n_patches = (H // patch[0]) * (W // patch[1])

    # Fast path: bf16 MXU operands, f32 accumulate.
    y_bf16 = patch_embed(x, weight, bias, patch_size=patch)
    jax.block_until_ready(y_bf16)
    assert y_bf16.shape == (B, n_patches, embed_dim)
    assert jnp.allclose(y_bf16, ref, atol=1e-2, rtol=1e-2)

    # Parity path: f32 operands, matches PyTorch's f32 Conv2d semantics.
    y_f32 = patch_embed(x, weight, bias, patch_size=patch,
                        compute_dtype=jnp.float32)
    jax.block_until_ready(y_f32)
    assert y_f32.shape == (B, n_patches, embed_dim)
    assert jnp.allclose(y_f32, ref, atol=5e-3, rtol=5e-3)

    print("KERNEL_OK")
</pallas_src>

<mosaic_0001>
module attributes {stable_mosaic.version = 11 : i64} {
  func.func @_patch_embed_kernel(%arg0: i32, %arg1: i32, %arg2: i32, %arg3: memref<64x128xbf16, #tpu.memory_space<vmem>>, %arg4: memref<128x128xbf16, #tpu.memory_space<vmem>>, %arg5: memref<1x128xf32, #tpu.memory_space<vmem>>, %arg6: memref<64x128xf32, #tpu.memory_space<vmem>>, %arg7: memref<64x128xf32, #tpu.memory_space<vmem>>) attributes {dimension_semantics = [#tpu.dimension_semantics<parallel>, #tpu.dimension_semantics<parallel>, #tpu.dimension_semantics<arbitrary>], iteration_bounds = array<i64: 1, 2, 1>, scalar_prefetch = 0 : i64, scratch_operands = 1 : i64, tpu.core_type = #tpu.core_type<tc>, window_params = [{transform_indices = @transform_0, window_bounds = array<i64: 64, 128>}, {transform_indices = @transform_1, window_bounds = array<i64: 128, 128>}, {transform_indices = @transform_2, window_bounds = array<i64: 1, 128>}, {transform_indices = @transform_3, window_bounds = array<i64: 64, 128>}]} {
    %c0_i32 = arith.constant 0 : i32
    %0 = arith.cmpi eq, %arg2, %c0_i32 : i32
    %1 = arith.extui %0 : i1 to i32
    %c0_i32_0 = arith.constant 0 : i32
    %2 = arith.cmpi ne, %1, %c0_i32_0 : i32
    scf.if %2 {
      %cst_10 = arith.constant 0.000000e+00 : f32
      %12 = vector.broadcast %cst_10 : f32 to vector<64x128xf32>
      %c0_11 = arith.constant 0 : index
      %c0_12 = arith.constant 0 : index
      %13 = vector.load %arg7[%c0_11, %c0_12] : memref<64x128xf32, #tpu.memory_space<vmem>>, vector<64x128xf32>
      tpu.vector_store %arg7[%c0_11, %c0_12], %12 {strides = array<i32>} : memref<64x128xf32, #tpu.memory_space<vmem>>, vector<64x128xf32>,
    } else {
    }
    %c0 = arith.constant 0 : index
    %c0_1 = arith.constant 0 : index
    %3 = vector.load %arg7[%c0, %c0_1] : memref<64x128xf32, #tpu.memory_space<vmem>>, vector<64x128xf32>
    %c0_2 = arith.constant 0 : index
    %c0_3 = arith.constant 0 : index
    %4 = vector.load %arg3[%c0_2, %c0_3] : memref<64x128xbf16, #tpu.memory_space<vmem>>, vector<64x128xbf16>
    %c0_4 = arith.constant 0 : index
    %c0_5 = arith.constant 0 : index
    %5 = vector.load %arg4[%c0_4, %c0_5] : memref<128x128xbf16, #tpu.memory_space<vmem>>, vector<128x128xbf16>
    %cst = arith.constant dense<0.000000e+00> : vector<64x128xf32>
    %6 = tpu.matmul %4, %5, %cst {dimension_numbers = #tpu.dot_dimension_numbers<[1], [0], [0], [1], [0, 0, 1, 1], [], []>} : vector<64x128xbf16>, vector<128x128xbf16>, vector<64x128xf32> -> vector<64x128xf32>
    %7 = arith.addf %3, %6 : vector<64x128xf32>
    %c0_6 = arith.constant 0 : index
    %c0_7 = arith.constant 0 : index
    %8 = vector.load %arg7[%c0_6, %c0_7] : memref<64x128xf32, #tpu.memory_space<vmem>>, vector<64x128xf32>
    tpu.vector_store %arg7[%c0_6, %c0_7], %7 {strides = array<i32>} : memref<64x128xf32, #tpu.memory_space<vmem>>, vector<64x128xf32>,
    %c0_i32_8 = arith.constant 0 : i32
    %9 = arith.cmpi eq, %arg2, %c0_i32_8 : i32
    %10 = arith.extui %9 : i1 to i32
    %c0_i32_9 = arith.constant 0 : i32
    %11 = arith.cmpi ne, %10, %c0_i32_9 : i32
    scf.if %11 {
      %c0_10 = arith.constant 0 : index
      %c0_11 = arith.constant 0 : index
      %12 = vector.load %arg7[%c0_10, %c0_11] : memref<64x128xf32, #tpu.memory_space<vmem>>, vector<64x128xf32>
      %c0_12 = arith.constant 0 : index
      %c0_13 = arith.constant 0 : index
      %13 = vector.load %arg5[%c0_12, %c0_13] : memref<1x128xf32, #tpu.memory_space<vmem>>, vector<1x128xf32>
      %14 = vector.broadcast %13 : vector<1x128xf32> to vector<64x128xf32>
      %15 = arith.addf %12, %14 : vector<64x128xf32>
      %c0_14 = arith.constant 0 : index
      %c0_15 = arith.constant 0 : index
      %16 = vector.load %arg6[%c0_14, %c0_15] : memref<64x128xf32, #tpu.memory_space<vmem>>, vector<64x128xf32>
      tpu.vector_store %arg6[%c0_14, %c0_15], %15 {strides = array<i32>} : memref<64x128xf32, #tpu.memory_space<vmem>>, vector<64x128xf32>,
    } else {
    }
    return
  }
  func.func @transform_0(%arg0: i32, %arg1: i32, %arg2: i32) -> (i32, i32) {
    %c0_i32 = arith.constant 0 : i32
    return %arg1, %arg2 : i32, i32
  }
  func.func @transform_1(%arg0: i32, %arg1: i32, %arg2: i32) -> (i32, i32) {
    %c0_i32 = arith.constant 0 : i32
    return %arg2, %arg0 : i32, i32
  }
  func.func @transform_2(%arg0: i32, %arg1: i32, %arg2: i32) -> (i32, i32) {
    %c0_i32 = arith.constant 0 : i32
    %c0_i32_0 = arith.constant 0 : i32
    return %c0_i32, %arg0 : i32, i32
  }
  func.func @transform_3(%arg0: i32, %arg1: i32, %arg2: i32) -> (i32, i32) {
    %c0_i32 = arith.constant 0 : i32
    return %arg1, %arg0 : i32, i32
  }
}

</mosaic_0001>

<llo_original>
// kernel: patch_embed.1
$region0: #{patch_embed.1}
  #allocation0 [shape = 'u32[]', space=smem, size = 0x4, offset = 0x4, fixed_abs, tag = 'smem constant byte address 0x4 - core index']
  #allocation1 [shape = 'u32[72,128]{1,0:T(1,128)}', space=vmem, size = 0x9000, scoped, tag = 'internal scratch']
  #allocation2 [shape = 'f32[64,128]{1,0:T(8,128)}', space=vmem, size = 0x8000, scoped, tag = 'scratch operand']
  %s0 = inlined_call_operand.vmem [shape: bf16[128,128], index: 0, kind: input, shape index: {}]
  %s1 = inlined_call_operand.vmem [shape: bf16[128,128], index: 1, kind: input, shape index: {}]
  %s2 = inlined_call_operand.vmem [shape: f32[1,128], index: 2, kind: input, shape index: {}]
  %s3 = inlined_call_operand.vmem [shape: f32[128,128], index: 3, kind: output, shape index: {}]
  %s4 = sld [smem:[#allocation0]]
  $region53: #{patch_embed.1} parent=0
    _
  %s6 = ssub.s32 1, %s4
  %s7 = scalar_select 0, %s6, %s4
  loop: start=0, step=1, limit=4
  $region2: #{patch_embed.1} parent=0 // loop_pre_header
    _
  $region3: #{patch_embed.1} parent=0 // loop_header
    %s9 = sphi 0, %s13
    %p10 = scmp.ge.s32.totalorder %s9, 4
    %s16 = sphi 0, %s35
    %s17 = sphi 0, %s31
    %s18 = sphi 0, %s27
    %s19 = sphi 0, %s16
    %s20 = sphi 0, %s17
    %s21 = sphi 0, %s18
    %s22 = sphi 0, %s19
    %s23 = sphi 0, %s20
    %s24 = sphi 0, %s21
    %s40 = sphi 0, %s42
    %s43 = sphi 0, %s40
    %s44 = sphi 0, %s43
    %s60 = sphi 0, %s44
    %s68 = sphi 0, %s70
    %s71 = sphi 0, %s68
    %s72 = sphi 0, %s71
    %s88 = sphi 0, %s72
    %s94 = sphi 0, %s96
    %s97 = sphi 0, %s94
    %s98 = sphi 0, %s97
    %s114 = sphi 0, %s98
    %s122 = sphi 0, %s124
    %s125 = sphi 0, %s122
    %s126 = sphi 0, %s125
    %s142 = sphi 0, %s126
  $region4: #{patch_embed.1} parent=0 // loop_header_branch
    %12 = sbr.rel (%p10) target = $region8
  $region5: #{patch_embed.1} parent=0 // loop_body
    %s14 = ssub.s32 %s9, 1
    %s15 = ssub.s32 %s9, 2
    %s25 = sadd.s32 1, %s18
    %p26 = scmp.ge.s32.totalorder %s25, 1
    %s27 = scalar_select %p26, 0, %s25
    %s28 = sadd.s32 1, %s17
    %s29 = scalar_select %p26, %s28, %s17
    %p30 = scmp.ge.s32.totalorder %s29, 2
    %s31 = scalar_select %p30, 0, %s29
    %s32 = sadd.s32 1, %s16
    %s33 = scalar_select %p30, %s32, %s16
    %p34 = scmp.ge.s32.totalorder %s33, 1
    %s35 = scalar_select %p34, 0, %s33
    %s36 = ssub.s32 %s17, %s31
    %s37 = ssub.s32 %s18, %s27
    %s38 = sor.u32 %s36, %s37
    %p39 = scmp.eq.s32.totalorder %s38, 0
    %s41 = sadd.s32 %s40, 1
    %s42 = scalar_select %p39, %s40, %s41
    %p45 = pneg %p39
    %p46 = scmp.eq.s32.totalorder %s9, 1
    %p47 = por %p45, %p46
    %p48 = scmp.ne.s32.totalorder %s40, %s43
    %p49 = scmp.eq.s32.totalorder %s9, 0
    %p50 = por %p48, %p49
    %p51 = scmp.ne.s32.totalorder %s40, %s43
    %p52 = scmp.eq.s32.totalorder %s14, 1
    %p53 = por %p51, %p52
    %p54 = scmp.ne.s32.totalorder %s43, %s44
    %p55 = scmp.eq.s32.totalorder %s14, 0
    %p56 = por %p54, %p55
    %p57 = scmp.ne.s32.totalorder %s43, %s44
    %p58 = scmp.eq.s32.totalorder %s15, 1
    %p59 = por %p57, %p58
    %p61 = scmp.ne.s32.totalorder %s44, %s60
    %p62 = scmp.eq.s32.totalorder %s15, 0
    %p63 = por %p61, %p62
    %s64 = ssub.s32 %s18, %s27
    %s65 = ssub.s32 %s16, %s35
    %s66 = sor.u32 %s64, %s65
    %p67 = scmp.eq.s32.totalorder %s66, 0
    %s69 = sadd.s32 %s68, 1
    %s70 = scalar_select %p67, %s68, %s69
    %p73 = pneg %p67
    %p74 = scmp.eq.s32.totalorder %s9, 1
    %p75 = por %p73, %p74
    %p76 = scmp.ne.s32.totalorder %s68, %s71
    %p77 = scmp.eq.s32.totalorder %s9, 0
    %p78 = por %p76, %p77
    %p79 = scmp.ne.s32.totalorder %s68, %s71
    %p80 = scmp.eq.s32.totalorder %s14, 1
    %p81 = por %p79, %p80
    %p82 = scmp.ne.s32.totalorder %s71, %s72
    %p83 = scmp.eq.s32.totalorder %s14, 0
    %p84 = por %p82, %p83
    %p85 = scmp.ne.s32.totalorder %s71, %s72
    %p86 = scmp.eq.s32.totalorder %s15, 1
    %p87 = por %p85, %p86
    %p89 = scmp.ne.s32.totalorder %s72, %s88
    %p90 = scmp.eq.s32.totalorder %s15, 0
    %p91 = por %p89, %p90
    %s92 = ssub.s32 %s16, %s35
    %p93 = scmp.eq.s32.totalorder %s92, 0
    %s95 = sadd.s32 %s94, 1
    %s96 = scalar_select %p93, %s94, %s95
    %p99 = pneg %p93
    %p100 = scmp.eq.s32.totalorder %s9, 1
    %p101 = por %p99, %p100
    %p102 = scmp.ne.s32.totalorder %s94, %s97
    %p103 = scmp.eq.s32.totalorder %s9, 0
    %p104 = por %p102, %p103
    %p105 = scmp.ne.s32.totalorder %s94, %s97
    %p106 = scmp.eq.s32.totalorder %s14, 1
    %p107 = por %p105, %p106
    %p108 = scmp.ne.s32.totalorder %s97, %s98
    %p109 = scmp.eq.s32.totalorder %s14, 0
    %p110 = por %p108, %p109
    %p111 = scmp.ne.s32.totalorder %s97, %s98
    %p112 = scmp.eq.s32.totalorder %s15, 1
    %p113 = por %p111, %p112
    %p115 = scmp.ne.s32.totalorder %s98, %s114
    %p116 = scmp.eq.s32.totalorder %s15, 0
    %p117 = por %p115, %p116
    %s118 = ssub.s32 %s17, %s31
    %s119 = ssub.s32 %s16, %s35
    %s120 = sor.u32 %s118, %s119
    %p121 = scmp.eq.s32.totalorder %s120, 0
    %s123 = sadd.s32 %s122, 1
    %s124 = scalar_select %p121, %s122, %s123
    %p127 = pneg %p121
    %p128 = scmp.eq.s32.totalorder %s9, 1
    %p129 = por %p127, %p128
    %p130 = scmp.ne.s32.totalorder %s122, %s125
    %p131 = scmp.eq.s32.totalorder %s9, 0
    %p132 = por %p130, %p131
    %p133 = scmp.ne.s32.totalorder %s122, %s125
    %p134 = scmp.eq.s32.totalorder %s14, 1
    %p135 = por %p133, %p134
    %p136 = scmp.ne.s32.totalorder %s125, %s126
    %p137 = scmp.eq.s32.totalorder %s14, 0
    %p138 = por %p136, %p137
    %p139 = scmp.ne.s32.totalorder %s125, %s126
    %p140 = scmp.eq.s32.totalorder %s15, 1
    %p141 = por %p139, %p140
    %p143 = scmp.ne.s32.totalorder %s126, %s142
    %p144 = scmp.eq.s32.totalorder %s15, 0
    %p145 = por %p143, %p144
    %p146 = scmp.le.s32.totalorder 1, %s9
    %p147 = scmp.lt.s32.totalorder %s9, 3
    %p148 = pnand %p146, %p147
    %p149 = pneg %p148
    // Predicated region
    $region9: #{patch_embed.1} parent=5 // pred_check
      _
    $region10: #{patch_embed.1} parent=5 // pred_check_branch
      %151 = sbr.rel (%p148) target = $region12
    $region11: #{patch_embed.1} parent=5 // pred_region
      %s152 = ssub.s32 %s9, 1
      // Predicated region
      $region13: #{patch_embed.1} parent=11 // pred_check
        %p153 = pneg %p84
      $region14: #{patch_embed.1} parent=11 // pred_check_branch
        %155 = sbr.rel (%p153) target = $region16
      $region15: #{patch_embed.1} parent=11 // pred_region
        %s156 = smul.u32 16, %s21
        %p157 = scmp.lt.s32.totalorder %s156, 15
        %s158 = scalar_select %p157, %s156, 15
        %p159 = scmp.lt.s32.totalorder %s19, 0
        %s160 = scalar_select %p159, %s19, 0
        %s161 = sadd.s32 %s160, %s158
        %s162 = smul.addr %s161, 4
        %s163 = scalar_lea.vmem %s1, %s162
        %s164 = smul.u32 16, %s21
      $region16: #{patch_embed.1} parent=11 // pred_fallthru
        _
      // Predicated region
      $region17: #{patch_embed.1} parent=11 // pred_check
        %p165 = pneg %p110
      $region18: #{patch_embed.1} parent=11 // pred_check_branch
        %167 = sbr.rel (%p165) target = $region20
      $region19: #{patch_embed.1} parent=11 // pred_region
        %p168 = scmp.lt.s32.totalorder %s19, 0
        %s169 = scalar_select %p168, %s19, 0
        %s170 = scalar_lea.vmem %s2, %s169
      $region20: #{patch_embed.1} parent=11 // pred_fallthru
        _
    $region12: #{patch_embed.1} parent=5 // pred_fallthru
      _
    %p171 = scmp.lt.s32.totalorder %s9, 2
    // Predicated region
    $region21: #{patch_embed.1} parent=5 // pred_check
      %p172 = pneg %p171
    $region22: #{patch_embed.1} parent=5 // pred_check_branch
      %174 = sbr.rel (%p172) target = $region24
    $region23: #{patch_embed.1} parent=5 // pred_region
      // Predicated region
      $region25: #{patch_embed.1} parent=23 // pred_check
        %p175 = pneg %p50
      $region26: #{patch_embed.1} parent=23 // pred_check_branch
        %177 = sbr.rel (%p175) target = $region28
      $region27: #{patch_embed.1} parent=23 // pred_region
        %s178 = smul.u32 8, %s17
        %p179 = scmp.lt.s32.totalorder %s178, 15
        %s180 = scalar_select %p179, %s178, 15
        %p181 = scmp.lt.s32.totalorder %s18, 0
        %s182 = scalar_select %p181, %s18, 0
        %s183 = sadd.s32 %s182, %s180
        %s184 = smul.addr %s183, 4
        %s185 = scalar_lea.vmem %s0, %s184
        %s186 = smul.u32 8, %s17
      $region28: #{patch_embed.1} parent=23 // pred_fallthru
        _
    $region24: #{patch_embed.1} parent=5 // pred_fallthru
      _
    %p187 = scmp.le.s32.totalorder 1, %s9
    %p188 = scmp.lt.s32.totalorder %s9, 3
    %p189 = pnand %p187, %p188
    %p190 = pneg %p189
    // Predicated region
    $region29: #{patch_embed.1} parent=5 // pred_check
      _
    $region30: #{patch_embed.1} parent=5 // pred_check_branch
      %192 = sbr.rel (%p189) target = $region32
    $region31: #{patch_embed.1} parent=5 // pred_region
      %s193 = ssub.s32 %s9, 1
      %s194 = smul.u32 8, %s20
      %p195 = scmp.lt.s32.totalorder %s194, 15
      %s196 = scalar_select %p195, %s194, 15
      %p197 = scmp.lt.s32.totalorder %s21, 0
      %s198 = scalar_select %p197, %s21, 0
      %s199 = sadd.s32 %s198, %s196
      %s200 = smul.addr %s199, 4
      %s201 = scalar_lea.vmem %s0, %s200
      %p202 = pneg %p56
      %p203 = pneg %p53
      %s204 = smul.u32 16, %s21
      %p205 = scmp.lt.s32.totalorder %s204, 15
      %s206 = scalar_select %p205, %s204, 15
      %p207 = scmp.lt.s32.totalorder %s19, 0
      %s208 = scalar_select %p207, %s19, 0
      %s209 = sadd.s32 %s208, %s206
      %s210 = smul.addr %s209, 4
      %s211 = scalar_lea.vmem %s1, %s210
      %p212 = pneg %p84
      %p213 = pneg %p81
      %p214 = scmp.lt.s32.totalorder %s19, 0
      %s215 = scalar_select %p214, %s19, 0
      %s216 = scalar_lea.vmem %s2, %s215
      %p217 = pneg %p110
      %p218 = pneg %p107
      %p219 = pneg %p138
      %p220 = pneg %p135
      %s221 = smul.u32 8, %s20
      %p222 = scmp.lt.s32.totalorder %s221, 15
      %s223 = scalar_select %p222, %s221, 15
      %p224 = scmp.lt.s32.totalorder %s19, 0
      %s225 = scalar_select %p224, %s19, 0
      %s226 = sadd.s32 %s225, %s223
      %s227 = smul.addr %s226, 8
      %s228 = scalar_lea.vmem %s3, %s227
      %s229 = smul.u32 8, %s20
      %p230 = scmp.lt.s32.totalorder %s229, 15
      %s231 = scalar_select %p230, %s229, 15
      %p232 = scmp.lt.s32.totalorder %s21, 0
      %s233 = scalar_select %p232, %s21, 0
      %s234 = sadd.s32 %s233, %s231
      %s235 = smul.addr %s234, 4
      %s236 = scalar_lea.vmem %s0, %s235
      %s237 = smul.u32 8, %s20
      %s238 = smul.u32 16, %s21
      %p239 = scmp.lt.s32.totalorder %s238, 15
      %s240 = scalar_select %p239, %s238, 15
      %p241 = scmp.lt.s32.totalorder %s19, 0
      %s242 = scalar_select %p241, %s19, 0
      %s243 = sadd.s32 %s242, %s240
      %s244 = smul.addr %s243, 4
      %s245 = scalar_lea.vmem %s1, %s244
      %s246 = smul.u32 16, %s21
      %p247 = scmp.lt.s32.totalorder %s19, 0
      %s248 = scalar_select %p247, %s19, 0
      %s249 = scalar_lea.vmem %s2, %s248
      %s250 = smul.u32 8, %s20
      %p251 = scmp.lt.s32.totalorder %s250, 15
      %s252 = scalar_select %p251, %s250, 15
      %p253 = scmp.lt.s32.totalorder %s19, 0
      %s254 = scalar_select %p253, %s19, 0
      %s255 = sadd.s32 %s254, %s252
      %s256 = smul.addr %s255, 8
      %s257 = scalar_lea.vmem %s3, %s256
      %s258 = smul.u32 8, %s20
      %p259 = scmp.eq.s32.totalorder %s21, 0
      // Predicated region
      $region33: #{patch_embed.1} parent=31 // pred_check
        %p260 = pneg %p259
      $region34: #{patch_embed.1} parent=31 // pred_check_branch
        %262 = sbr.rel (%p260) target = $region36
      $region35: #{patch_embed.1} parent=31 // pred_region
        %263 = vst [vmem:[#allocation2] sm:$0xff] 0.0
        %264 = vst [vmem:[#allocation2 + $0x8] sm:$0xff] 0.0
        %265 = vst [vmem:[#allocation2 + $0x10] sm:$0xff] 0.0
        %266 = vst [vmem:[#allocation2 + $0x18] sm:$0xff] 0.0
        %267 = vst [vmem:[#allocation2 + $0x20] sm:$0xff] 0.0
        %268 = vst [vmem:[#allocation2 + $0x28] sm:$0xff] 0.0
        %269 = vst [vmem:[#allocation2 + $0x30] sm:$0xff] 0.0
        %270 = vst [vmem:[#allocation2 + $0x38] sm:$0xff] 0.0
      $region36: #{patch_embed.1} parent=31 // pred_fallthru
        _
      %v271 = vld [vmem:[#allocation2] sm:$0xff]
      %v272 = vld [vmem:[#allocation2 + $0x8] sm:$0xff]
      %v273 = vld [vmem:[#allocation2 + $0x10] sm:$0xff]
      %v274 = vld [vmem:[#allocation2 + $0x18] sm:$0xff]
      %v275 = vld [vmem:[#allocation2 + $0x20] sm:$0xff]
      %v276 = vld [vmem:[#allocation2 + $0x28] sm:$0xff]
      %v277 = vld [vmem:[#allocation2 + $0x30] sm:$0xff]
      %v278 = vld [vmem:[#allocation2 + $0x38] sm:$0xff]
      %v279 = vld [vmem:[%s236] sm:$0xf]
      %v280 = vld [vmem:[%s236 + $0x4] sm:$0xf]
      %v281 = vld [vmem:[%s236 + $0x8] sm:$0xf]
      %v282 = vld [vmem:[%s236 + $0xc] sm:$0xf]
      %v283 = vld [vmem:[%s236 + $0x10] sm:$0xf]
      %v284 = vld [vmem:[%s236 + $0x14] sm:$0xf]
      %v285 = vld [vmem:[%s236 + $0x18] sm:$0xf]
      %v286 = vld [vmem:[%s236 + $0x1c] sm:$0xf]
      %v287 = vld [vmem:[%s245] sm:$0xf]
      %v288 = vld [vmem:[%s245 + $0x4] sm:$0xf]
      %v289 = vld [vmem:[%s245 + $0x8] sm:$0xf]
      %v290 = vld [vmem:[%s245 + $0xc] sm:$0xf]
      %v291 = vld [vmem:[%s245 + $0x10] sm:$0xf]
      %v292 = vld [vmem:[%s245 + $0x14] sm:$0xf]
      %v293 = vld [vmem:[%s245 + $0x18] sm:$0xf]
      %v294 = vld [vmem:[%s245 + $0x1c] sm:$0xf]
      %v295 = vld [vmem:[%s245 + $0x20] sm:$0xf]
      %v296 = vld [vmem:[%s245 + $0x24] sm:$0xf]
      %v297 = vld [vmem:[%s245 + $0x28] sm:$0xf]
      %v298 = vld [vmem:[%s245 + $0x2c] sm:$0xf]
      %v299 = vld [vmem:[%s245 + $0x30] sm:$0xf]
      %v300 = vld [vmem:[%s245 + $0x34] sm:$0xf]
      %v301 = vld [vmem:[%s245 + $0x38] sm:$0xf]
      %v302 = vld [vmem:[%s245 + $0x3c] sm:$0xf]
      %v311 = vunpack.c.l.b16 %v279
      %v312 = vunpack.c.l.b16 %v280
      %v313 = vunpack.c.l.b16 %v281
      %v314 = vunpack.c.l.b16 %v282
      %v315 = vunpack.c.l.b16 %v283
      %v316 = vunpack.c.l.b16 %v284
      %v317 = vunpack.c.l.b16 %v285
      %v318 = vunpack.c.l.b16 %v286
      %v319 = vpack.c.b16 %v312, %v311
      %v320 = vpack.c.b16 %v314, %v313
      %v321 = vpack.c.b16 %v316, %v315
      %v322 = vpack.c.b16 %v318, %v317
      %v343 = vunpack.c.l.b16 %v287
      %v344 = vunpack.c.l.b16 %v288
      %v345 = vunpack.c.l.b16 %v289
      %v346 = vunpack.c.l.b16 %v290
      %v347 = vunpack.c.l.b16 %v291
      %v348 = vunpack.c.l.b16 %v292
      %v349 = vunpack.c.l.b16 %v293
      %v350 = vunpack.c.l.b16 %v294
      %v351 = vunpack.c.l.b16 %v295
      %v352 = vunpack.c.l.b16 %v296
      %v353 = vunpack.c.l.b16 %v297
      %v354 = vunpack.c.l.b16 %v298
      %v355 = vunpack.c.l.b16 %v299
      %v356 = vunpack.c.l.b16 %v300
      %v357 = vunpack.c.l.b16 %v301
      %v358 = vunpack.c.l.b16 %v302
      %v359 = vpack.c.b16 %v344, %v343
      %v360 = vpack.c.b16 %v346, %v345
      %v361 = vpack.c.b16 %v348, %v347
      %v362 = vpack.c.b16 %v350, %v349
      %v363 = vpack.c.b16 %v352, %v351
      %v364 = vpack.c.b16 %v354, %v353
      %v365 = vpack.c.b16 %v356, %v355
      %v366 = vpack.c.b16 %v358, %v357
      %375 = vmatpush.bf16.msra.mxu0 %v366
      %376 = vmatpush.bf16.msra.mxu0 %v365
      %377 = vmatpush.bf16.msra.mxu0 %v364
      %378 = vmatpush.bf16.msra.mxu0 %v363
      %379 = vmatpush.bf16.msra.mxu0 %v362
      %380 = vmatpush.bf16.msra.mxu0 %v361
      %381 = vmatpush.bf16.msra.mxu0 %v360
      %382 = vmatpush.bf16.msra.mxu0 %v359
      %383 = vmatmul.bf16.gmra.mxu0 %v319
      %v384 = vpop.f32.mrf.mxu0
      %v385 = vadd.f32 0.0, %v384
      %v386 = vpop.f32.mrf.mxu0
      %v387 = vadd.f32 0.0, %v386
      %388 = vmatmul.bf16.gmra.mxu0 %v320
      %v389 = vpop.f32.mrf.mxu0
      %v390 = vadd.f32 0.0, %v389
      %v391 = vpop.f32.mrf.mxu0
      %v392 = vadd.f32 0.0, %v391
      %393 = vmatmul.bf16.gmra.mxu0 %v321
      %v394 = vpop.f32.mrf.mxu0
      %v395 = vadd.f32 0.0, %v394
      %v396 = vpop.f32.mrf.mxu0
      %v397 = vadd.f32 0.0, %v396
      %398 = vmatmul.bf16.gmra.mxu0 %v322
      %v399 = vpop.f32.mrf.mxu0
      %v400 = vadd.f32 0.0, %v399
      %v401 = vpop.f32.mrf.mxu0
      %v402 = vadd.f32 0.0, %v401
      %403 = vdwg.mxu0
      %v404 = vadd.f32 %v271, %v385
      %v405 = vadd.f32 %v272, %v387
      %v406 = vadd.f32 %v273, %v390
      %v407 = vadd.f32 %v274, %v392
      %v408 = vadd.f32 %v275, %v395
      %v409 = vadd.f32 %v276, %v397
      %v410 = vadd.f32 %v277, %v400
      %v411 = vadd.f32 %v278, %v402
      %412 = vst [vmem:[#allocation2] sm:$0xff] %v404
      %413 = vst [vmem:[#allocation2 + $0x8] sm:$0xff] %v405
      %414 = vst [vmem:[#allocation2 + $0x10] sm:$0xff] %v406
      %415 = vst [vmem:[#allocation2 + $0x18] sm:$0xff] %v407
      %416 = vst [vmem:[#allocation2 + $0x20] sm:$0xff] %v408
      %417 = vst [vmem:[#allocation2 + $0x28] sm:$0xff] %v409
      %418 = vst [vmem:[#allocation2 + $0x30] sm:$0xff] %v410
      %419 = vst [vmem:[#allocation2 + $0x38] sm:$0xff] %v411
      // Predicated region
      $region37: #{patch_embed.1} parent=31 // pred_check
        %p420 = pneg %p259
      $region38: #{patch_embed.1} parent=31 // pred_check_branch
        %422 = sbr.rel (%p420) target = $region40
      $region39: #{patch_embed.1} parent=31 // pred_region
        %v423 = vld [vmem:[#allocation2] sm:$0xff]
        %v424 = vld [vmem:[#allocation2 + $0x8] sm:$0xff]
        %v425 = vld [vmem:[#allocation2 + $0x10] sm:$0xff]
        %v426 = vld [vmem:[#allocation2 + $0x18] sm:$0xff]
        %v427 = vld [vmem:[#allocation2 + $0x20] sm:$0xff]
        %v428 = vld [vmem:[#allocation2 + $0x28] sm:$0xff]
        %v429 = vld [vmem:[#allocation2 + $0x30] sm:$0xff]
        %v430 = vld [vmem:[#allocation2 + $0x38] sm:$0xff]
        %v431 = vld [vmem:[%s249] sm:$0x1]
        %v433 = vperm.slane %v431, 0
        %v435 = vadd.f32 %v423, %v433
        %v436 = vadd.f32 %v424, %v433
        %v437 = vadd.f32 %v425, %v433
        %v438 = vadd.f32 %v426, %v433
        %v439 = vadd.f32 %v427, %v433
        %v440 = vadd.f32 %v428, %v433
        %v441 = vadd.f32 %v429, %v433
        %v442 = vadd.f32 %v430, %v433
        %443 = vst [vmem:[%s257] sm:$0xff] %v435
        %444 = vst [vmem:[%s257 + $0x8] sm:$0xff] %v436
        %445 = vst [vmem:[%s257 + $0x10] sm:$0xff] %v437
        %446 = vst [vmem:[%s257 + $0x18] sm:$0xff] %v438
        %447 = vst [vmem:[%s257 + $0x20] sm:$0xff] %v439
        %448 = vst [vmem:[%s257 + $0x28] sm:$0xff] %v440
        %449 = vst [vmem:[%s257 + $0x30] sm:$0xff] %v441
        %450 = vst [vmem:[%s257 + $0x38] sm:$0xff] %v442
      $region40: #{patch_embed.1} parent=31 // pred_fallthru
        _
      %s451 = smul.u32 8, %s20
      %p452 = scmp.lt.s32.totalorder %s451, 15
      %s453 = scalar_select %p452, %s451, 15
      %p454 = scmp.lt.s32.totalorder %s19, 0
      %s455 = scalar_select %p454, %s19, 0
      %s456 = sadd.s32 %s455, %s453
      %s457 = smul.addr %s456, 8
      %s458 = scalar_lea.vmem %s3, %s457
      // Predicated region
      $region41: #{patch_embed.1} parent=31 // pred_check
        %p459 = pneg %p135
      $region42: #{patch_embed.1} parent=31 // pred_check_branch
        %461 = sbr.rel (%p459) target = $region44
      $region43: #{patch_embed.1} parent=31 // pred_region
        %s462 = smul.u32 8, %s20
      $region44: #{patch_embed.1} parent=31 // pred_fallthru
        _
    $region32: #{patch_embed.1} parent=5 // pred_fallthru
      _
    %p463 = scmp.le.s32.totalorder 2, %s9
    // Predicated region
    $region45: #{patch_embed.1} parent=5 // pred_check
      %p464 = pneg %p463
    $region46: #{patch_embed.1} parent=5 // pred_check_branch
      %466 = sbr.rel (%p464) target = $region48
    $region47: #{patch_embed.1} parent=5 // pred_region
      %s467 = ssub.s32 %s9, 2
      // Predicated region
      $region49: #{patch_embed.1} parent=47 // pred_check
        %p468 = pneg %p141
      $region50: #{patch_embed.1} parent=47 // pred_check_branch
        %470 = sbr.rel (%p468) target = $region52
      $region51: #{patch_embed.1} parent=47 // pred_region
        %s471 = smul.u32 8, %s23
        %p472 = scmp.lt.s32.totalorder %s471, 15
        %s473 = scalar_select %p472, %s471, 15
        %p474 = scmp.lt.s32.totalorder %s22, 0
        %s475 = scalar_select %p474, %s22, 0
        %s476 = sadd.s32 %s475, %s473
        %s477 = smul.addr %s476, 8
        %s478 = scalar_lea.vmem %s3, %s477
      $region52: #{patch_embed.1} parent=47 // pred_fallthru
        _
    $region48: #{patch_embed.1} parent=5 // pred_fallthru
      _
  $region6: #{patch_embed.1} parent=0 // loop_footer
    %s13 = sadd.s32 1, %s9
  $region7: #{patch_embed.1} parent=0 // loop_footer_branch
    %8 = sbr.rel target = $region3
  $region8: #{patch_embed.1} parent=0 // loop_exit
    _

</llo_original>
